<compile_context>
chip_gen: v7x
topology: tpu7x:2x2x1
jax: 0.10.0
libtpu: 0.0.40
codegen_flags: <defaults>
</compile_context>

<pallas_src>
import functools

import jax
import jax.numpy as jnp
from jax import lax
from jax.experimental import pallas as pl


# ----------------------------------------------------------------------------
# Fused Pallas kernel (feature-major layout: tensors are [feat, nodes/edges])
# ----------------------------------------------------------------------------
def _sage_fused_kernel(xT_ref, adj0T_ref, adj1T_ref, w_ref, b_ref, idx_ref,
                       out_ref, *, f_in, n_hidden, n1, n2, e_pad):
    f32 = jnp.float32
    F, H = f_in, n_hidden

    xT = xT_ref[...]                                # (F, n0)
    W = w_ref[...]                                  # (H, 2F + 4H) weight slab
    B = b_ref[...]                                  # (H, 8)       bias slab

    w0 = W[:, 0:2 * F]                              # [ws0 | wn0]   (H, 2F)
    w1 = W[:, 2 * F:2 * F + 2 * H]                  # [ws1 | wn1]   (H, 2H)
    pw1 = W[:, 2 * F + 2 * H:2 * F + 3 * H]         # (H, H)
    pw2 = W[:, 2 * F + 3 * H:2 * F + 4 * H]         # (H, H)

    b0, b1 = B[:, 0:1], B[:, 1:2]
    pb1, pb2 = B[:, 2:3], B[:, 3:4]
    pw3 = B[:, 4:5]                                 # Linear(H,1) weight as a column
    pb3 = B[0:1, 5:6]                               # scalar bias (1, 1)

    # ---- SAGEConv layer 0: mean agg + fused self/neigh transform + ReLU ------
    hn0 = jnp.dot(xT, adj0T_ref[...], preferred_element_type=f32)        # (F, n1)
    feat0 = jnp.concatenate([xT[:, :n1], hn0], axis=0)                   # (2F, n1)
    h1 = jnp.dot(w0, feat0, preferred_element_type=f32) + b0             # (H, n1)
    h1 = jnp.maximum(h1, 0.0)

    # ---- SAGEConv layer 1 (no ReLU after last layer) --------------------------
    hn1 = jnp.dot(h1, adj1T_ref[...], preferred_element_type=f32)        # (H, n2)
    feat1 = jnp.concatenate([h1[:, :n2], hn1], axis=0)                   # (2H, n2)
    h2 = jnp.dot(w1, feat1, preferred_element_type=f32) + b1             # (H, n2)

    # ---- Edge gather: ONE one-hot matmul for [src | dst] (pos & neg batched) --
    idx = idx_ref[...]                                                   # (1, 2*Ep) int32
    node_iota = lax.broadcasted_iota(jnp.int32, (n2, 2 * e_pad), 0)
    oh = (node_iota == idx).astype(f32)                                  # (n2, 2*Ep)
    hsd = jnp.dot(h2, oh, preferred_element_type=f32)                    # (H, 2*Ep)
    g = hsd[:, :e_pad] * hsd[:, e_pad:]                                  # (H, Ep)

    # ---- Predictor MLP ---------------------------------------------------------
    z = jnp.maximum(jnp.dot(pw1, g, preferred_element_type=f32) + pb1, 0.0)
    z = jnp.maximum(jnp.dot(pw2, z, preferred_element_type=f32) + pb2, 0.0)
    # Final Linear(H, 1): broadcast-mul + sublane reduction -> lane-dense (1, Ep)
    out_ref[...] = jnp.sum(z * pw3, axis=0, keepdims=True) + pb3


# ----------------------------------------------------------------------------
# Wrapper: single grid-less pallas_call, everything resident in VMEM
# ----------------------------------------------------------------------------
def _full_spec(shape):
    return pl.BlockSpec(shape, lambda: (0,) * len(shape))


def _round_up(n, m):
    return ((n + m - 1) // m) * m


def sage_forward(blocks, x, layer_params, pred_params, pos_edges, neg_edges):
    """Mirror of SAGE.forward.

    blocks       : [adj0 (n1, n0), adj1 (n2, n1)] row-normalized mean-agg matrices
    x            : (n0, in_feats) input node features
    layer_params : [(W_self, W_neigh, bias), ...]  with W in PyTorch [out, in] layout
    pred_params  : (w1, b1, w2, b2, w3, b3)        PyTorch-layout predictor weights
    pos_edges / neg_edges : (src_idx, dst_idx) int arrays indexing the final n2 nodes
    """
    adj0, adj1 = blocks
    (ws0, wn0, b0), (ws1, wn1, b1) = layer_params
    pw1, pb1, pw2, pb2, pw3, pb3 = pred_params

    n1, n0 = adj0.shape
    n2 = adj1.shape[0]
    in_feats = x.shape[1]
    H = ws0.shape[0]
    # DGL MFG convention: dst nodes are the leading prefix of src nodes.
    assert n1 <= n0 and n2 <= n1

    f32 = jnp.float32
    pos_src, pos_dst = pos_edges
    neg_src, neg_dst = neg_edges
    n_pos = int(pos_src.shape[0])
    n_neg = int(neg_src.shape[0])
    two_e = n_pos + n_neg
    e_pad = max(_round_up(two_e, 128), 128)          # lane-dense edge axis

    src_idx = jnp.concatenate([pos_src, neg_src]).astype(jnp.int32)
    dst_idx = jnp.concatenate([pos_dst, neg_dst]).astype(jnp.int32)
    pad = e_pad - two_e
    src_idx = jnp.pad(src_idx, (0, pad))              # dummy (valid) index 0
    dst_idx = jnp.pad(dst_idx, (0, pad))
    idx = jnp.concatenate([src_idx, dst_idx])[None, :]           # (1, 2*Ep)

    # Weight slab: [W0cat | W1cat | pw1 | pw2]  ->  (H, 2*F_in + 4*H)
    w_slab = jnp.concatenate(
        [jnp.concatenate([ws0, wn0], axis=1),
         jnp.concatenate([ws1, wn1], axis=1),
         pw1, pw2], axis=1).astype(f32)

    # Bias slab (H, 8): columns = b0, b1, pb1, pb2, pw3^T, pb3, 0, 0
    def _col(v):
        return v.reshape(-1, 1).astype(f32)

    pb3_col = jnp.concatenate(
        [pb3.reshape(1, 1).astype(f32), jnp.zeros((H - 1, 1), f32)], axis=0)
    b_slab = jnp.concatenate(
        [_col(b0), _col(b1), _col(pb1), _col(pb2),
         pw3.reshape(1, H).T.astype(f32), pb3_col,
         jnp.zeros((H, 2), f32)], axis=1)                        # (H, 8)

    operands = (
        x.T.astype(f32),                  # (F_in, n0) feature-major node features
        adj0.T.astype(f32),               # (n0, n1)
        adj1.T.astype(f32),               # (n1, n2)
        w_slab,                           # (H, 2F+4H)
        b_slab,                           # (H, 8)
        idx,                              # (1, 2*Ep) int32
    )

    flops = 2 * (in_feats * n0 * n1                   # layer-0 mean aggregation
                 + H * (2 * in_feats) * n1            # layer-0 fused transform
                 + H * n1 * n2                        # layer-1 mean aggregation
                 + H * (2 * H) * n2                   # layer-1 fused transform
                 + H * n2 * (2 * e_pad)               # merged one-hot gather
                 + 2 * H * H * e_pad                  # predictor Linear(H,H) x2
                 + H * e_pad)                         # final Linear(H,1) reduction
    bytes_accessed = sum(int(a.size) * a.dtype.itemsize for a in operands) + 4 * e_pad

    kernel = functools.partial(_sage_fused_kernel, f_in=in_feats, n_hidden=H,
                               n1=n1, n2=n2, e_pad=e_pad)
    scores_row = pl.pallas_call(
        kernel,
        out_shape=jax.ShapeDtypeStruct((1, e_pad), jnp.float32),
        in_specs=[_full_spec(a.shape) for a in operands],
        out_specs=_full_spec((1, e_pad)),
        cost_estimate=pl.CostEstimate(flops=flops, transcendentals=0,
                                      bytes_accessed=bytes_accessed),
    )(*operands)

    scores = scores_row[0, :two_e].reshape(-1, 1)     # (2E, 1)
    return scores[:n_pos], scores[n_pos:]


# ----------------------------------------------------------------------------
# Deterministic parameter / input construction (PyTorch-style layouts)
# ----------------------------------------------------------------------------
def _init_linear(key, f_out, f_in, scale=0.1):
    kw, kb = jax.random.split(key)
    w = scale * jax.random.normal(kw, (f_out, f_in), jnp.float32)   # [out, in]
    b = scale * jax.random.normal(kb, (f_out,), jnp.float32)
    return w, b


def _make_mean_adj(key, n_dst, n_src, p=0.3):
    a = (jax.random.uniform(key, (n_dst, n_src)) < p).astype(jnp.float32)
    deg = jnp.maximum(a.sum(axis=1, keepdims=True), 1.0)            # avoid div-by-zero
    return a / deg


if __name__ == "__main__":
    key = jax.random.PRNGKey(0)
    in_feats, n_hidden = 16, 32
    n0, n1, n2 = 64, 32, 16      # src of block0, src of block1 / dst of block0, final dst
    n_edges = 8

    keys = jax.random.split(key, 16)

    # SAGEConv layer 0: in_feats -> n_hidden ; layer 1: n_hidden -> n_hidden
    ws0, _ = _init_linear(keys[0], n_hidden, in_feats)
    wn0, _ = _init_linear(keys[1], n_hidden, in_feats)
    b0 = 0.05 * jax.random.normal(keys[2], (n_hidden,), jnp.float32)
    ws1, _ = _init_linear(keys[3], n_hidden, n_hidden)
    wn1, _ = _init_linear(keys[4], n_hidden, n_hidden)
    b1 = 0.05 * jax.random.normal(keys[5], (n_hidden,), jnp.float32)
    layer_params = [(ws0, wn0, b0), (ws1, wn1, b1)]

    # Predictor: Linear(H,H)+ReLU, Linear(H,H)+ReLU, Linear(H,1)
    pw1, pb1 = _init_linear(keys[6], n_hidden, n_hidden)
    pw2, pb2 = _init_linear(keys[7], n_hidden, n_hidden)
    pw3, pb3 = _init_linear(keys[8], 1, n_hidden)
    pred_params = (pw1, pb1, pw2, pb2, pw3, pb3)

    # Blocks (bipartite graphs) as dense row-normalized mean-aggregation matrices
    adj0 = _make_mean_adj(keys[9], n1, n0)
    adj1 = _make_mean_adj(keys[10], n2, n1)
    blocks = [adj0, adj1]

    # Input node features and edge endpoint indices (into the final n2 nodes)
    x = jax.random.normal(keys[11], (n0, in_feats), jnp.float32)
    pos_src = jax.random.randint(keys[12], (n_edges,), 0, n2)
    pos_dst = jax.random.randint(keys[13], (n_edges,), 0, n2)
    neg_src = jax.random.randint(keys[14], (n_edges,), 0, n2)
    neg_dst = jax.random.randint(keys[15], (n_edges,), 0, n2)

    fwd = jax.jit(sage_forward)
    h_pos, h_neg = fwd(blocks, x, layer_params, pred_params,
                       (pos_src, pos_dst), (neg_src, neg_dst))
    jax.block_until_ready((h_pos, h_neg))

    assert h_pos.shape == (n_edges, 1) and h_neg.shape == (n_edges, 1)
    assert jnp.all(jnp.isfinite(h_pos)) and jnp.all(jnp.isfinite(h_neg))
    print("KERNEL_OK")
</pallas_src>

<mosaic_0001>
module attributes {stable_mosaic.version = 11 : i64} {
  func.func @_sage_fused_kernel(%arg0: memref<16x64xf32, #tpu.memory_space<vmem>>, %arg1: memref<64x32xf32, #tpu.memory_space<vmem>>, %arg2: memref<32x16xf32, #tpu.memory_space<vmem>>, %arg3: memref<32x160xf32, #tpu.memory_space<vmem>>, %arg4: memref<32x8xf32, #tpu.memory_space<vmem>>, %arg5: memref<1x256xi32, #tpu.memory_space<vmem>>, %arg6: memref<1x128xf32, #tpu.memory_space<vmem>>) attributes {dimension_semantics = [], scalar_prefetch = 0 : i64, scratch_operands = 0 : i64, tpu.core_type = #tpu.core_type<tc>} {
    %c0 = arith.constant 0 : index
    %c0_0 = arith.constant 0 : index
    %0 = vector.load %arg0[%c0, %c0_0] : memref<16x64xf32, #tpu.memory_space<vmem>>, vector<16x64xf32>
    %c0_1 = arith.constant 0 : index
    %c0_2 = arith.constant 0 : index
    %1 = vector.load %arg3[%c0_1, %c0_2] : memref<32x160xf32, #tpu.memory_space<vmem>>, vector<32x160xf32>
    %c0_3 = arith.constant 0 : index
    %c0_4 = arith.constant 0 : index
    %2 = vector.load %arg4[%c0_3, %c0_4] : memref<32x8xf32, #tpu.memory_space<vmem>>, vector<32x8xf32>
    %3 = vector.extract_strided_slice %1 {offsets = [0, 0], sizes = [32, 32], strides = [1, 1]} : vector<32x160xf32> to vector<32x32xf32>
    %4 = vector.extract_strided_slice %1 {offsets = [0, 32], sizes = [32, 64], strides = [1, 1]} : vector<32x160xf32> to vector<32x64xf32>
    %5 = vector.extract_strided_slice %1 {offsets = [0, 96], sizes = [32, 32], strides = [1, 1]} : vector<32x160xf32> to vector<32x32xf32>
    %6 = vector.extract_strided_slice %1 {offsets = [0, 128], sizes = [32, 32], strides = [1, 1]} : vector<32x160xf32> to vector<32x32xf32>
    %7 = vector.extract_strided_slice %2 {offsets = [0, 0], sizes = [32, 1], strides = [1, 1]} : vector<32x8xf32> to vector<32x1xf32>
    %8 = vector.extract_strided_slice %2 {offsets = [0, 1], sizes = [32, 1], strides = [1, 1]} : vector<32x8xf32> to vector<32x1xf32>
    %9 = vector.extract_strided_slice %2 {offsets = [0, 2], sizes = [32, 1], strides = [1, 1]} : vector<32x8xf32> to vector<32x1xf32>
    %10 = vector.extract_strided_slice %2 {offsets = [0, 3], sizes = [32, 1], strides = [1, 1]} : vector<32x8xf32> to vector<32x1xf32>
    %11 = vector.extract_strided_slice %2 {offsets = [0, 4], sizes = [32, 1], strides = [1, 1]} : vector<32x8xf32> to vector<32x1xf32>
    %12 = vector.extract_strided_slice %2 {offsets = [0, 5], sizes = [1, 1], strides = [1, 1]} : vector<32x8xf32> to vector<1x1xf32>
    %c0_5 = arith.constant 0 : index
    %c0_6 = arith.constant 0 : index
    %13 = vector.load %arg1[%c0_5, %c0_6] : memref<64x32xf32, #tpu.memory_space<vmem>>, vector<64x32xf32>
    %cst = arith.constant dense<0.000000e+00> : vector<16x32xf32>
    %14 = tpu.matmul %0, %13, %cst {dimension_numbers = #tpu.dot_dimension_numbers<[1], [0], [0], [1], [0, 0, 1, 1], [], []>} : vector<16x64xf32>, vector<64x32xf32>, vector<16x32xf32> -> vector<16x32xf32>
    %15 = vector.extract_strided_slice %0 {offsets = [0, 0], sizes = [16, 32], strides = [1, 1]} : vector<16x64xf32> to vector<16x32xf32>
    %16 = tpu.concatenate %15, %14 in 0 : vector<16x32xf32>, vector<16x32xf32> -> vector<32x32xf32>
    %cst_7 = arith.constant dense<0.000000e+00> : vector<32x32xf32>
    %17 = tpu.matmul %3, %16, %cst_7 {dimension_numbers = #tpu.dot_dimension_numbers<[1], [0], [0], [1], [0, 0, 1, 1], [], []>} : vector<32x32xf32>, vector<32x32xf32>, vector<32x32xf32> -> vector<32x32xf32>
    %18 = vector.broadcast %7 : vector<32x1xf32> to vector<32x32xf32>
    %19 = arith.addf %17, %18 : vector<32x32xf32>
    %cst_8 = arith.constant 0.000000e+00 : f32
    %20 = vector.broadcast %cst_8 : f32 to vector<32x32xf32>
    %21 = arith.maximumf %19, %20 : vector<32x32xf32>
    %c0_9 = arith.constant 0 : index
    %c0_10 = arith.constant 0 : index
    %22 = vector.load %arg2[%c0_9, %c0_10] : memref<32x16xf32, #tpu.memory_space<vmem>>, vector<32x16xf32>
    %cst_11 = arith.constant dense<0.000000e+00> : vector<32x16xf32>
    %23 = tpu.matmul %21, %22, %cst_11 {dimension_numbers = #tpu.dot_dimension_numbers<[1], [0], [0], [1], [0, 0, 1, 1], [], []>} : vector<32x32xf32>, vector<32x16xf32>, vector<32x16xf32> -> vector<32x16xf32>
    %24 = vector.extract_strided_slice %21 {offsets = [0, 0], sizes = [32, 16], strides = [1, 1]} : vector<32x32xf32> to vector<32x16xf32>
    %25 = tpu.concatenate %24, %23 in 0 : vector<32x16xf32>, vector<32x16xf32> -> vector<64x16xf32>
    %cst_12 = arith.constant dense<0.000000e+00> : vector<32x16xf32>
    %26 = tpu.matmul %4, %25, %cst_12 {dimension_numbers = #tpu.dot_dimension_numbers<[1], [0], [0], [1], [0, 0, 1, 1], [], []>} : vector<32x64xf32>, vector<64x16xf32>, vector<32x16xf32> -> vector<32x16xf32>
    %27 = vector.broadcast %8 : vector<32x1xf32> to vector<32x16xf32>
    %28 = arith.addf %26, %27 : vector<32x16xf32>
    %c0_13 = arith.constant 0 : index
    %c0_14 = arith.constant 0 : index
    %29 = vector.load %arg5[%c0_13, %c0_14] : memref<1x256xi32, #tpu.memory_space<vmem>>, vector<1x256xi32>
    %30 = tpu.iota {dimensions = array<i32: 0>} : vector<16x256xi32>
    %31 = vector.broadcast %29 : vector<1x256xi32> to vector<16x256xi32>
    %32 = arith.cmpi eq, %30, %31 : vector<16x256xi32>
    %33 = arith.extui %32 : vector<16x256xi1> to vector<16x256xi32>
    %34 = arith.sitofp %33 : vector<16x256xi32> to vector<16x256xf32>
    %cst_15 = arith.constant dense<0.000000e+00> : vector<32x256xf32>
    %35 = tpu.matmul %28, %34, %cst_15 {dimension_numbers = #tpu.dot_dimension_numbers<[1], [0], [0], [1], [0, 0, 1, 1], [], []>} : vector<32x16xf32>, vector<16x256xf32>, vector<32x256xf32> -> vector<32x256xf32>
    %36 = vector.extract_strided_slice %35 {offsets = [0, 0], sizes = [32, 128], strides = [1, 1]} : vector<32x256xf32> to vector<32x128xf32>
    %37 = vector.extract_strided_slice %35 {offsets = [0, 128], sizes = [32, 128], strides = [1, 1]} : vector<32x256xf32> to vector<32x128xf32>
    %38 = arith.mulf %36, %37 : vector<32x128xf32>
    %cst_16 = arith.constant dense<0.000000e+00> : vector<32x128xf32>
    %39 = tpu.matmul %5, %38, %cst_16 {dimension_numbers = #tpu.dot_dimension_numbers<[1], [0], [0], [1], [0, 0, 1, 1], [], []>} : vector<32x32xf32>, vector<32x128xf32>, vector<32x128xf32> -> vector<32x128xf32>
    %40 = vector.broadcast %9 : vector<32x1xf32> to vector<32x128xf32>
    %41 = arith.addf %39, %40 : vector<32x128xf32>
    %cst_17 = arith.constant 0.000000e+00 : f32
    %42 = vector.broadcast %cst_17 : f32 to vector<32x128xf32>
    %43 = arith.maximumf %41, %42 : vector<32x128xf32>
    %cst_18 = arith.constant dense<0.000000e+00> : vector<32x128xf32>
    %44 = tpu.matmul %6, %43, %cst_18 {dimension_numbers = #tpu.dot_dimension_numbers<[1], [0], [0], [1], [0, 0, 1, 1], [], []>} : vector<32x32xf32>, vector<32x128xf32>, vector<32x128xf32> -> vector<32x128xf32>
    %45 = vector.broadcast %10 : vector<32x1xf32> to vector<32x128xf32>
    %46 = arith.addf %44, %45 : vector<32x128xf32>
    %cst_19 = arith.constant 0.000000e+00 : f32
    %47 = vector.broadcast %cst_19 : f32 to vector<32x128xf32>
    %48 = arith.maximumf %46, %47 : vector<32x128xf32>
    %49 = vector.broadcast %11 : vector<32x1xf32> to vector<32x128xf32>
    %50 = arith.mulf %48, %49 : vector<32x128xf32>
    %cst_20 = arith.constant dense<0.000000e+00> : vector<128xf32>
    %51 = vector.multi_reduction <add>, %50, %cst_20 [0] : vector<32x128xf32> to vector<128xf32>
    %52 = vector.shape_cast %51 : vector<128xf32> to vector<1x128xf32>
    %53 = vector.broadcast %12 : vector<1x1xf32> to vector<1x128xf32>
    %54 = arith.addf %52, %53 : vector<1x128xf32>
    %c0_21 = arith.constant 0 : index
    %c0_22 = arith.constant 0 : index
    %55 = vector.load %arg6[%c0_21, %c0_22] : memref<1x128xf32, #tpu.memory_space<vmem>>, vector<1x128xf32>
    tpu.vector_store %arg6[%c0_21, %c0_22], %54 {strides = array<i32>} : memref<1x128xf32, #tpu.memory_space<vmem>>, vector<1x128xf32>,
    return
  }
}

</mosaic_0001>

<llo_original>
// kernel: sage_forward.1
$region0: #{sage_forward.1}
  #allocation0 [shape = 'u32[]', space=smem, size = 0x4, offset = 0x4, fixed_abs, tag = 'smem constant byte address 0x4 - core index']
  #allocation1 [shape = 'u32[144,128]{1,0:T(1,128)}', space=vmem, size = 0x12000, scoped, tag = 'internal scratch']
  %s0 = inlined_call_operand.vmem [shape: f32[16,64], index: 0, kind: input, shape index: {}]
  %s1 = inlined_call_operand.vmem [shape: f32[64,32], index: 1, kind: input, shape index: {}]
  %s2 = inlined_call_operand.vmem [shape: f32[32,16], index: 2, kind: input, shape index: {}]
  %s3 = inlined_call_operand.vmem [shape: f32[32,160], index: 3, kind: input, shape index: {}]
  %s4 = inlined_call_operand.vmem [shape: f32[32,8], index: 4, kind: input, shape index: {}]
  %s5 = inlined_call_operand.vmem [shape: s32[1,256], index: 5, kind: input, shape index: {}]
  %s6 = inlined_call_operand.vmem [shape: f32[1,128], index: 6, kind: output, shape index: {}]
  %s7 = sld [smem:[#allocation0]]
  $region34: #{sage_forward.1} parent=0
    _
  %s9 = ssub.s32 1, %s7
  %s10 = scalar_select 0, %s9, %s7
  // Predicated region
  $region2: #{sage_forward.1} parent=0 // pred_check
    _
  $region3: #{sage_forward.1} parent=0 // pred_check_branch
    %12 = sbr.rel (0) target = $region5
  $region4: #{sage_forward.1} parent=0 // pred_region
    _
  $region5: #{sage_forward.1} parent=0 // pred_fallthru
    _
  // Predicated region
  $region6: #{sage_forward.1} parent=0 // pred_check
    _
  $region7: #{sage_forward.1} parent=0 // pred_check_branch
    %14 = sbr.rel (0) target = $region9
  $region8: #{sage_forward.1} parent=0 // pred_region
    _
  $region9: #{sage_forward.1} parent=0 // pred_fallthru
    _
  // Predicated region
  $region10: #{sage_forward.1} parent=0 // pred_check
    _
  $region11: #{sage_forward.1} parent=0 // pred_check_branch
    %16 = sbr.rel (0) target = $region13
  $region12: #{sage_forward.1} parent=0 // pred_region
    _
  $region13: #{sage_forward.1} parent=0 // pred_fallthru
    _
  // Predicated region
  $region14: #{sage_forward.1} parent=0 // pred_check
    _
  $region15: #{sage_forward.1} parent=0 // pred_check_branch
    %18 = sbr.rel (0) target = $region17
  $region16: #{sage_forward.1} parent=0 // pred_region
    _
  $region17: #{sage_forward.1} parent=0 // pred_fallthru
    _
  // Predicated region
  $region18: #{sage_forward.1} parent=0 // pred_check
    _
  $region19: #{sage_forward.1} parent=0 // pred_check_branch
    %20 = sbr.rel (0) target = $region21
  $region20: #{sage_forward.1} parent=0 // pred_region
    _
  $region21: #{sage_forward.1} parent=0 // pred_fallthru
    _
  // Predicated region
  $region22: #{sage_forward.1} parent=0 // pred_check
    _
  $region23: #{sage_forward.1} parent=0 // pred_check_branch
    %22 = sbr.rel (0) target = $region25
  $region24: #{sage_forward.1} parent=0 // pred_region
    _
  $region25: #{sage_forward.1} parent=0 // pred_fallthru
    _
  %v23 = vld [vmem:[%s0] sm:$0xff]
  %v24 = vld [vmem:[%s0 + $0x8] sm:$0xff]
  %v25 = vld [vmem:[%s3] sm:$0xff]
  %v26 = vld [vmem:[%s3 + $0x8] sm:$0xff]
  %v27 = vld [vmem:[%s3 + $0x10] sm:$0xff]
  %v28 = vld [vmem:[%s3 + $0x18] sm:$0xff]
  %v29 = vld [vmem:[%s3 + $0x20] sm:$0xff]
  %v30 = vld [vmem:[%s3 + $0x28] sm:$0xff]
  %v31 = vld [vmem:[%s3 + $0x30] sm:$0xff]
  %v32 = vld [vmem:[%s3 + $0x38] sm:$0xff]
  %v33 = vld [vmem:[%s4] sm:$0xff]
  %v34 = vld [vmem:[%s4 + $0x8] sm:$0xff]
  %v35 = vld [vmem:[%s4 + $0x10] sm:$0xff]
  %v36 = vld [vmem:[%s4 + $0x18] sm:$0xff]
  %v37 = vld [vmem:[%s1] sm:$0xff]
  %v38 = vld [vmem:[%s1 + $0x8] sm:$0xff]
  %v39 = vld [vmem:[%s1 + $0x10] sm:$0xff]
  %v40 = vld [vmem:[%s1 + $0x18] sm:$0xff]
  %v41 = vld [vmem:[%s1 + $0x20] sm:$0xff]
  %v42 = vld [vmem:[%s1 + $0x28] sm:$0xff]
  %v43 = vld [vmem:[%s1 + $0x30] sm:$0xff]
  %v44 = vld [vmem:[%s1 + $0x38] sm:$0xff]
  %vm45 = vcmask 523264
  %v47 = vsel %vm45, %v23, 0
  %v50 = vsel %vm45, %v24, 0
  %52 = vmatprep.subr.mxu0 0.0
  %53 = vmatpush1.msra.mxu0 %v37
  %54 = vmatprep.subr.mxu0 0.0
  %55 = vmatpush1.msra.mxu0 %v38
  %56 = vmatprep.subr.mxu0 0.0
  %57 = vmatpush1.msra.mxu0 %v39
  %58 = vmatprep.subr.mxu0 0.0
  %59 = vmatpush1.msra.mxu0 %v40
  %60 = vmatprep.subr.mxu0 0.0
  %61 = vmatpush1.msra.mxu0 %v41
  %62 = vmatprep.subr.mxu0 0.0
  %63 = vmatpush1.msra.mxu0 %v42
  %64 = vmatprep.subr.mxu0 0.0
  %65 = vmatpush1.msra.mxu0 %v43
  %66 = vmatprep.subr.mxu0 0.0
  %67 = vmatpush1.msra.mxu0 %v44
  %68 = vmatprep.subr.mxu0 0.0
  %69 = vmatpush1.msra.mxu0 0.0
  %70 = vmatprep.subr.mxu0 0.0
  %71 = vmatpush1.msra.mxu0 0.0
  %72 = vmatprep.subr.mxu0 0.0
  %73 = vmatpush1.msra.mxu0 0.0
  %74 = vmatprep.subr.mxu0 0.0
  %75 = vmatpush1.msra.mxu0 0.0
  %76 = vmatprep.subr.mxu0 0.0
  %77 = vmatpush1.msra.mxu0 0.0
  %78 = vmatprep.subr.mxu0 0.0
  %79 = vmatpush1.msra.mxu0 0.0
  %80 = vmatprep.subr.mxu0 0.0
  %81 = vmatpush1.msra.mxu0 0.0
  %82 = vmatprep.subr.mxu0 0.0
  %83 = vmatpush1.msra.mxu0 0.0
  %84 = vmatprep.subr.mxu0 0.0
  %85 = vmatpush1.msra.mxu0 0.0
  %86 = vmatprep.subr.mxu0 0.0
  %87 = vmatpush1.msra.mxu0 0.0
  %88 = vmatprep.subr.mxu0 0.0
  %89 = vmatpush1.msra.mxu0 0.0
  %90 = vmatprep.subr.mxu0 0.0
  %91 = vmatpush1.msra.mxu0 0.0
  %92 = vmatprep.subr.mxu0 0.0
  %93 = vmatpush1.msra.mxu0 0.0
  %94 = vmatprep.subr.mxu0 0.0
  %95 = vmatpush1.msra.mxu0 0.0
  %96 = vmatprep.subr.mxu0 0.0
  %97 = vmatpush1.msra.mxu0 0.0
  %98 = vmatprep.subr.mxu0 0.0
  %99 = vmatpush1.msra.mxu0 0.0
  %100 = vmatprep.subr.mxu0 0.0
  %101 = vmatpush1.msra.mxu0 0.0
  %102 = vmatprep.subr.mxu0 0.0
  %103 = vmatpush1.msra.mxu0 0.0
  %104 = vmatprep.subr.mxu0 0.0
  %105 = vmatpush1.msra.mxu0 0.0
  %106 = vmatprep.subr.mxu0 0.0
  %107 = vmatpush1.msra.mxu0 0.0
  %108 = vmatprep.subr.mxu0 0.0
  %109 = vmatpush1.msra.mxu0 0.0
  %110 = vmatprep.subr.mxu0 0.0
  %111 = vmatpush1.msra.mxu0 0.0
  %112 = vmatprep.subr.mxu0 0.0
  %113 = vmatpush1.msra.mxu0 0.0
  %114 = vmatprep.subr.mxu0 0.0
  %115 = vmatpush1.msra.mxu0 0.0
  %116 = vmatprep.mubr.f32.mxu0 0.0
  %117 = vmatmul.mubr.f32.gmra.mrb[0].mxu0 %v47
  %v118 = vpop.f32.mrb[0].mxu0
  %v119 = vadd.f32 0.0, %v118
  %v120 = vpop.f32.mrb[0].mxu0
  %121 = vmatprep.mubr.f32.mxu0 0.0
  %122 = vmatmul.mubr.f32.gmra.mrb[0].mxu0 %v50
  %v123 = vpop.f32.mrb[0].mxu0
  %v124 = vadd.f32 0.0, %v123
  %v125 = vpop.f32.mrb[0].mxu0
  %126 = vdwg.mxu0
  %128 = vset.pattern.permute.xlu0 0
  %129 = vperm.xlu0 %128, %v33
  %v130 = vpop.permute.xlu0 %129
  %133 = vset.pattern.permute.xlu0 0
  %134 = vperm.xlu0 %133, %v34
  %v135 = vpop.permute.xlu0 %134
  %138 = vset.pattern.permute.xlu0 0
  %139 = vperm.xlu0 %138, %v35
  %v140 = vpop.permute.xlu0 %139
  %143 = vset.pattern.permute.xlu0 0
  %144 = vperm.xlu0 %143, %v36
  %v145 = vpop.permute.xlu0 %144
  %vm147 = vcmask 261120
  %v149 = vsel %vm147, %v25, 0
  %v152 = vsel %vm147, %v27, 0
  %v155 = vsel %vm147, %v29, 0
  %v158 = vsel %vm147, %v31, 0
  %160 = vmatprep.subr.mxu0 0.0
  %161 = vmatpush1.msra.mxu0 %v23
  %162 = vmatprep.subr.mxu0 0.0
  %163 = vmatpush1.msra.mxu0 %v24
  %164 = vmatprep.subr.mxu0 0.0
  %165 = vmatpush1.msra.mxu0 %v119
  %166 = vmatprep.subr.mxu0 0.0
  %167 = vmatpush1.msra.mxu0 %v124
  %168 = vmatprep.subr.mxu0 0.0
  %169 = vmatpush1.msra.mxu0 0.0
  %170 = vmatprep.subr.mxu0 0.0
  %171 = vmatpush1.msra.mxu0 0.0
  %172 = vmatprep.subr.mxu0 0.0
  %173 = vmatpush1.msra.mxu0 0.0
  %174 = vmatprep.subr.mxu0 0.0
  %175 = vmatpush1.msra.mxu0 0.0
  %176 = vmatprep.subr.mxu0 0.0
  %177 = vmatpush1.msra.mxu0 0.0
  %178 = vmatprep.subr.mxu0 0.0
  %179 = vmatpush1.msra.mxu0 0.0
  %180 = vmatprep.subr.mxu0 0.0
  %181 = vmatpush1.msra.mxu0 0.0
  %182 = vmatprep.subr.mxu0 0.0
  %183 = vmatpush1.msra.mxu0 0.0
  %184 = vmatprep.subr.mxu0 0.0
  %185 = vmatpush1.msra.mxu0 0.0
  %186 = vmatprep.subr.mxu0 0.0
  %187 = vmatpush1.msra.mxu0 0.0
  %188 = vmatprep.subr.mxu0 0.0
  %189 = vmatpush1.msra.mxu0 0.0
  %190 = vmatprep.subr.mxu0 0.0
  %191 = vmatpush1.msra.mxu0 0.0
  %192 = vmatprep.subr.mxu0 0.0
  %193 = vmatpush1.msra.mxu0 0.0
  %194 = vmatprep.subr.mxu0 0.0
  %195 = vmatpush1.msra.mxu0 0.0
  %196 = vmatprep.subr.mxu0 0.0
  %197 = vmatpush1.msra.mxu0 0.0
  %198 = vmatprep.subr.mxu0 0.0
  %199 = vmatpush1.msra.mxu0 0.0
  %200 = vmatprep.subr.mxu0 0.0
  %201 = vmatpush1.msra.mxu0 0.0
  %202 = vmatprep.subr.mxu0 0.0
  %203 = vmatpush1.msra.mxu0 0.0
  %204 = vmatprep.subr.mxu0 0.0
  %205 = vmatpush1.msra.mxu0 0.0
  %206 = vmatprep.subr.mxu0 0.0
  %207 = vmatpush1.msra.mxu0 0.0
  %208 = vmatprep.subr.mxu0 0.0
  %209 = vmatpush1.msra.mxu0 0.0
  %210 = vmatprep.subr.mxu0 0.0
  %211 = vmatpush1.msra.mxu0 0.0
  %212 = vmatprep.subr.mxu0 0.0
  %213 = vmatpush1.msra.mxu0 0.0
  %214 = vmatprep.subr.mxu0 0.0
  %215 = vmatpush1.msra.mxu0 0.0
  %216 = vmatprep.subr.mxu0 0.0
  %217 = vmatpush1.msra.mxu0 0.0
  %218 = vmatprep.subr.mxu0 0.0
  %219 = vmatpush1.msra.mxu0 0.0
  %220 = vmatprep.subr.mxu0 0.0
  %221 = vmatpush1.msra.mxu0 0.0
  %222 = vmatprep.subr.mxu0 0.0
  %223 = vmatpush1.msra.mxu0 0.0
  %224 = vmatprep.mubr.f32.mxu0 0.0
  %225 = vmatmul.mubr.f32.gmra.mrb[0].mxu0 %v149
  %v226 = vpop.f32.mrb[0].mxu0
  %v227 = vadd.f32 %v130, %v226
  %v228 = vpop.f32.mrb[0].mxu0
  %229 = vmatprep.mubr.f32.mxu0 0.0
  %230 = vmatmul.mubr.f32.gmra.mrb[0].mxu0 %v152
  %v231 = vpop.f32.mrb[0].mxu0
  %v232 = vadd.f32 %v135, %v231
  %v233 = vpop.f32.mrb[0].mxu0
  %234 = vmatprep.mubr.f32.mxu0 0.0
  %235 = vmatmul.mubr.f32.gmra.mrb[0].mxu0 %v155
  %v236 = vpop.f32.mrb[0].mxu0
  %v237 = vadd.f32 %v140, %v236
  %v238 = vpop.f32.mrb[0].mxu0
  %239 = vmatprep.mubr.f32.mxu0 0.0
  %240 = vmatmul.mubr.f32.gmra.mrb[0].mxu0 %v158
  %v241 = vpop.f32.mrb[0].mxu0
  %v242 = vadd.f32 %v145, %v241
  %v243 = vpop.f32.mrb[0].mxu0
  %244 = vdwg.mxu0
  %v245 = vmax.f32 %v227, 0.0
  %v246 = vmax.f32 %v232, 0.0
  %v247 = vmax.f32 %v237, 0.0
  %v248 = vmax.f32 %v242, 0.0
  %v249 = vld [vmem:[%s2] sm:$0xff]
  %v250 = vld [vmem:[%s2 + $0x8] sm:$0xff]
  %v251 = vld [vmem:[%s2 + $0x10] sm:$0xff]
  %v252 = vld [vmem:[%s2 + $0x18] sm:$0xff]
  %v254 = vsel %vm147, %v245, 0
  %v257 = vsel %vm147, %v246, 0
  %v260 = vsel %vm147, %v247, 0
  %v263 = vsel %vm147, %v248, 0
  %265 = vmatprep.subr.mxu0 0.0
  %266 = vmatpush1.msra.mxu0 %v249
  %267 = vmatprep.subr.mxu0 0.0
  %268 = vmatpush1.msra.mxu0 %v250
  %269 = vmatprep.subr.mxu0 0.0
  %270 = vmatpush1.msra.mxu0 %v251
  %271 = vmatprep.subr.mxu0 0.0
  %272 = vmatpush1.msra.mxu0 %v252
  %273 = vmatprep.subr.mxu0 0.0
  %274 = vmatpush1.msra.mxu0 0.0
  %275 = vmatprep.subr.mxu0 0.0
  %276 = vmatpush1.msra.mxu0 0.0
  %277 = vmatprep.subr.mxu0 0.0
  %278 = vmatpush1.msra.mxu0 0.0
  %279 = vmatprep.subr.mxu0 0.0
  %280 = vmatpush1.msra.mxu0 0.0
  %281 = vmatprep.subr.mxu0 0.0
  %282 = vmatpush1.msra.mxu0 0.0
  %283 = vmatprep.subr.mxu0 0.0
  %284 = vmatpush1.msra.mxu0 0.0
  %285 = vmatprep.subr.mxu0 0.0
  %286 = vmatpush1.msra.mxu0 0.0
  %287 = vmatprep.subr.mxu0 0.0
  %288 = vmatpush1.msra.mxu0 0.0
  %289 = vmatprep.subr.mxu0 0.0
  %290 = vmatpush1.msra.mxu0 0.0
  %291 = vmatprep.subr.mxu0 0.0
  %292 = vmatpush1.msra.mxu0 0.0
  %293 = vmatprep.subr.mxu0 0.0
  %294 = vmatpush1.msra.mxu0 0.0
  %295 = vmatprep.subr.mxu0 0.0
  %296 = vmatpush1.msra.mxu0 0.0
  %297 = vmatprep.subr.mxu0 0.0
  %298 = vmatpush1.msra.mxu0 0.0
  %299 = vmatprep.subr.mxu0 0.0
  %300 = vmatpush1.msra.mxu0 0.0
  %301 = vmatprep.subr.mxu0 0.0
  %302 = vmatpush1.msra.mxu0 0.0
  %303 = vmatprep.subr.mxu0 0.0
  %304 = vmatpush1.msra.mxu0 0.0
  %305 = vmatprep.subr.mxu0 0.0
  %306 = vmatpush1.msra.mxu0 0.0
  %307 = vmatprep.subr.mxu0 0.0
  %308 = vmatpush1.msra.mxu0 0.0
  %309 = vmatprep.subr.mxu0 0.0
  %310 = vmatpush1.msra.mxu0 0.0
  %311 = vmatprep.subr.mxu0 0.0
  %312 = vmatpush1.msra.mxu0 0.0
  %313 = vmatprep.subr.mxu0 0.0
  %314 = vmatpush1.msra.mxu0 0.0
  %315 = vmatprep.subr.mxu0 0.0
  %316 = vmatpush1.msra.mxu0 0.0
  %317 = vmatprep.subr.mxu0 0.0
  %318 = vmatpush1.msra.mxu0 0.0
  %319 = vmatprep.subr.mxu0 0.0
  %320 = vmatpush1.msra.mxu0 0.0
  %321 = vmatprep.subr.mxu0 0.0
  %322 = vmatpush1.msra.mxu0 0.0
  %323 = vmatprep.subr.mxu0 0.0
  %324 = vmatpush1.msra.mxu0 0.0
  %325 = vmatprep.subr.mxu0 0.0
  %326 = vmatpush1.msra.mxu0 0.0
  %327 = vmatprep.subr.mxu0 0.0
  %328 = vmatpush1.msra.mxu0 0.0
  %329 = vmatprep.mubr.f32.mxu0 0.0
  %330 = vmatmul.mubr.f32.gmra.mrb[0].mxu0 %v254
  %v331 = vpop.f32.mrb[0].mxu0
  %v332 = vadd.f32 0.0, %v331
  %v333 = vpop.f32.mrb[0].mxu0
  %334 = vmatprep.mubr.f32.mxu0 0.0
  %335 = vmatmul.mubr.f32.gmra.mrb[0].mxu0 %v257
  %v336 = vpop.f32.mrb[0].mxu0
  %v337 = vadd.f32 0.0, %v336
  %v338 = vpop.f32.mrb[0].mxu0
  %339 = vmatprep.mubr.f32.mxu0 0.0
  %340 = vmatmul.mubr.f32.gmra.mrb[0].mxu0 %v260
  %v341 = vpop.f32.mrb[0].mxu0
  %v342 = vadd.f32 0.0, %v341
  %v343 = vpop.f32.mrb[0].mxu0
  %344 = vmatprep.mubr.f32.mxu0 0.0
  %345 = vmatmul.mubr.f32.gmra.mrb[0].mxu0 %v263
  %v346 = vpop.f32.mrb[0].mxu0
  %v347 = vadd.f32 0.0, %v346
  %v348 = vpop.f32.mrb[0].mxu0
  %349 = vdwg.mxu0
  %350 = vset.pattern.permute.xlu0 1
  %351 = vperm.xlu0 %350, %v33
  %v352 = vpop.permute.xlu0 %351
  %354 = vset.pattern.permute.xlu0 1
  %355 = vperm.xlu0 %354, %v34
  %v356 = vpop.permute.xlu0 %355
  %358 = vset.pattern.permute.xlu0 1
  %359 = vperm.xlu0 %358, %v35
  %v360 = vpop.permute.xlu0 %359
  %362 = vset.pattern.permute.xlu0 1
  %363 = vperm.xlu0 %362, %v36
  %v364 = vpop.permute.xlu0 %363
  %366 = vrot.lane.b32.xlu0 %v25, 96
  %v367 = vpop.permute.xlu0 %366
  %368 = vrot.lane.b32.xlu0 %v27, 96
  %v369 = vpop.permute.xlu0 %368
  %370 = vrot.lane.b32.xlu0 %v29, 96
  %v371 = vpop.permute.xlu0 %370
  %372 = vrot.lane.b32.xlu0 %v31, 96
  %v373 = vpop.permute.xlu0 %372
  %v374 = vsel %vm45, %v367, 0
  %v376 = vsel %vm45, %v369, 0
  %v378 = vsel %vm45, %v371, 0
  %v380 = vsel %vm45, %v373, 0
  %382 = vmatprep.subr.mxu0 0.0
  %383 = vmatpush1.msra.mxu0 %v245
  %384 = vmatprep.subr.mxu0 0.0
  %385 = vmatpush1.msra.mxu0 %v246
  %386 = vmatprep.subr.mxu0 0.0
  %387 = vmatpush1.msra.mxu0 %v247
  %388 = vmatprep.subr.mxu0 0.0
  %389 = vmatpush1.msra.mxu0 %v248
  %390 = vmatprep.subr.mxu0 0.0
  %391 = vmatpush1.msra.mxu0 %v332
  %392 = vmatprep.subr.mxu0 0.0
  %393 = vmatpush1.msra.mxu0 %v337
  %394 = vmatprep.subr.mxu0 0.0
  %395 = vmatpush1.msra.mxu0 %v342
  %396 = vmatprep.subr.mxu0 0.0
  %397 = vmatpush1.msra.mxu0 %v347
  %398 = vmatprep.subr.mxu0 0.0
  %399 = vmatpush1.msra.mxu0 0.0
  %400 = vmatprep.subr.mxu0 0.0
  %401 = vmatpush1.msra.mxu0 0.0
  %402 = vmatprep.subr.mxu0 0.0
  %403 = vmatpush1.msra.mxu0 0.0
  %404 = vmatprep.subr.mxu0 0.0
  %405 = vmatpush1.msra.mxu0 0.0
  %406 = vmatprep.subr.mxu0 0.0
  %407 = vmatpush1.msra.mxu0 0.0
  %408 = vmatprep.subr.mxu0 0.0
  %409 = vmatpush1.msra.mxu0 0.0
  %410 = vmatprep.subr.mxu0 0.0
  %411 = vmatpush1.msra.mxu0 0.0
  %412 = vmatprep.subr.mxu0 0.0
  %413 = vmatpush1.msra.mxu0 0.0
  %414 = vmatprep.subr.mxu0 0.0
  %415 = vmatpush1.msra.mxu0 0.0
  %416 = vmatprep.subr.mxu0 0.0
  %417 = vmatpush1.msra.mxu0 0.0
  %418 = vmatprep.subr.mxu0 0.0
  %419 = vmatpush1.msra.mxu0 0.0
  %420 = vmatprep.subr.mxu0 0.0
  %421 = vmatpush1.msra.mxu0 0.0
  %422 = vmatprep.subr.mxu0 0.0
  %423 = vmatpush1.msra.mxu0 0.0
  %424 = vmatprep.subr.mxu0 0.0
  %425 = vmatpush1.msra.mxu0 0.0
  %426 = vmatprep.subr.mxu0 0.0
  %427 = vmatpush1.msra.mxu0 0.0
  %428 = vmatprep.subr.mxu0 0.0
  %429 = vmatpush1.msra.mxu0 0.0
  %430 = vmatprep.subr.mxu0 0.0
  %431 = vmatpush1.msra.mxu0 0.0
  %432 = vmatprep.subr.mxu0 0.0
  %433 = vmatpush1.msra.mxu0 0.0
  %434 = vmatprep.subr.mxu0 0.0
  %435 = vmatpush1.msra.mxu0 0.0
  %436 = vmatprep.subr.mxu0 0.0
  %437 = vmatpush1.msra.mxu0 0.0
  %438 = vmatprep.subr.mxu0 0.0
  %439 = vmatpush1.msra.mxu0 0.0
  %440 = vmatprep.subr.mxu0 0.0
  %441 = vmatpush1.msra.mxu0 0.0
  %442 = vmatprep.subr.mxu0 0.0
  %443 = vmatpush1.msra.mxu0 0.0
  %444 = vmatprep.subr.mxu0 0.0
  %445 = vmatpush1.msra.mxu0 0.0
  %446 = vmatprep.mubr.f32.mxu0 0.0
  %447 = vmatmul.mubr.f32.gmra.mrb[0].mxu0 %v374
  %v448 = vpop.f32.mrb[0].mxu0
  %v449 = vadd.f32 %v352, %v448
  %v450 = vpop.f32.mrb[0].mxu0
  %451 = vmatprep.mubr.f32.mxu0 0.0
  %452 = vmatmul.mubr.f32.gmra.mrb[0].mxu0 %v376
  %v453 = vpop.f32.mrb[0].mxu0
  %v454 = vadd.f32 %v356, %v453
  %v455 = vpop.f32.mrb[0].mxu0
  %456 = vmatprep.mubr.f32.mxu0 0.0
  %457 = vmatmul.mubr.f32.gmra.mrb[0].mxu0 %v378
  %v458 = vpop.f32.mrb[0].mxu0
  %v459 = vadd.f32 %v360, %v458
  %v460 = vpop.f32.mrb[0].mxu0
  %461 = vmatprep.mubr.f32.mxu0 0.0
  %462 = vmatmul.mubr.f32.gmra.mrb[0].mxu0 %v380
  %v463 = vpop.f32.mrb[0].mxu0
  %v464 = vadd.f32 %v364, %v463
  %v465 = vpop.f32.mrb[0].mxu0
  %466 = vdwg.mxu0
  %v467 = vld [vmem:[%s5] sm:$0x3]
  %v468 = vlaneseq
  %v469 = vshrl.u32 %v468, 7
  %v470 = vadd.s32 %v469, 8
  %v471 = vlaneseq
  %v472 = vshrl.u32 %v471, 7
  %v473 = vsub.s32 0, %v472
  %v474 = vrot.slane %v467, %v473
  %v475 = vlaneseq
  %v476 = vshrl.u32 %v475, 7
  %v477 = vsub.s32 1, %v476
  %v478 = vrot.slane %v467, %v477
  %vm479 = vcmp.eq.s32.totalorder %v469, %v474
  %vm480 = vcmp.eq.s32.totalorder %v469, %v478
  %vm481 = vcmp.eq.s32.totalorder %v470, %v474
  %vm482 = vcmp.eq.s32.totalorder %v470, %v478
  %v483 = vsel %vm479, 1, 0
  %v484 = vsel %vm480, 1, 0
  %v485 = vsel %vm481, 1, 0
  %v486 = vsel %vm482, 1, 0
  %v487 = vcvt.s32.f32 %v483
  %v488 = vcvt.s32.f32 %v484
  %v489 = vcvt.s32.f32 %v485
  %v490 = vcvt.s32.f32 %v486
  %vm491 = vcmask 130048
  %v493 = vsel %vm491, %v449, 0
  %v496 = vsel %vm491, %v454, 0
  %v499 = vsel %vm491, %v459, 0
  %v502 = vsel %vm491, %v464, 0
  %504 = vmatprep.subr.mxu0 %v488
  %505 = vmatpush1.msra.mxu0 %v487
  %506 = vmatprep.subr.mxu0 %v490
  %507 = vmatpush1.msra.mxu0 %v489
  %508 = vmatprep.subr.mxu0 0.0
  %509 = vmatpush1.msra.mxu0 0.0
  %510 = vmatprep.subr.mxu0 0.0
  %511 = vmatpush1.msra.mxu0 0.0
  %512 = vmatprep.subr.mxu0 0.0
  %513 = vmatpush1.msra.mxu0 0.0
  %514 = vmatprep.subr.mxu0 0.0
  %515 = vmatpush1.msra.mxu0 0.0
  %516 = vmatprep.subr.mxu0 0.0
  %517 = vmatpush1.msra.mxu0 0.0
  %518 = vmatprep.subr.mxu0 0.0
  %519 = vmatpush1.msra.mxu0 0.0
  %520 = vmatprep.subr.mxu0 0.0
  %521 = vmatpush1.msra.mxu0 0.0
  %522 = vmatprep.subr.mxu0 0.0
  %523 = vmatpush1.msra.mxu0 0.0
  %524 = vmatprep.subr.mxu0 0.0
  %525 = vmatpush1.msra.mxu0 0.0
  %526 = vmatprep.subr.mxu0 0.0
  %527 = vmatpush1.msra.mxu0 0.0
  %528 = vmatprep.subr.mxu0 0.0
  %529 = vmatpush1.msra.mxu0 0.0
  %530 = vmatprep.subr.mxu0 0.0
  %531 = vmatpush1.msra.mxu0 0.0
  %532 = vmatprep.subr.mxu0 0.0
  %533 = vmatpush1.msra.mxu0 0.0
  %534 = vmatprep.subr.mxu0 0.0
  %535 = vmatpush1.msra.mxu0 0.0
  %536 = vmatprep.subr.mxu0 0.0
  %537 = vmatpush1.msra.mxu0 0.0
  %538 = vmatprep.subr.mxu0 0.0
  %539 = vmatpush1.msra.mxu0 0.0
  %540 = vmatprep.subr.mxu0 0.0
  %541 = vmatpush1.msra.mxu0 0.0
  %542 = vmatprep.subr.mxu0 0.0
  %543 = vmatpush1.msra.mxu0 0.0
  %544 = vmatprep.subr.mxu0 0.0
  %545 = vmatpush1.msra.mxu0 0.0
  %546 = vmatprep.subr.mxu0 0.0
  %547 = vmatpush1.msra.mxu0 0.0
  %548 = vmatprep.subr.mxu0 0.0
  %549 = vmatpush1.msra.mxu0 0.0
  %550 = vmatprep.subr.mxu0 0.0
  %551 = vmatpush1.msra.mxu0 0.0
  %552 = vmatprep.subr.mxu0 0.0
  %553 = vmatpush1.msra.mxu0 0.0
  %554 = vmatprep.subr.mxu0 0.0
  %555 = vmatpush1.msra.mxu0 0.0
  %556 = vmatprep.subr.mxu0 0.0
  %557 = vmatpush1.msra.mxu0 0.0
  %558 = vmatprep.subr.mxu0 0.0
  %559 = vmatpush1.msra.mxu0 0.0
  %560 = vmatprep.subr.mxu0 0.0
  %561 = vmatpush1.msra.mxu0 0.0
  %562 = vmatprep.subr.mxu0 0.0
  %563 = vmatpush1.msra.mxu0 0.0
  %564 = vmatprep.subr.mxu0 0.0
  %565 = vmatpush1.msra.mxu0 0.0
  %566 = vmatprep.subr.mxu0 0.0
  %567 = vmatpush1.msra.mxu0 0.0
  %568 = vmatprep.mubr.f32.mxu0 0.0
  %569 = vmatmul.mubr.f32.gmra.mrb[0].mxu0 %v493
  %v570 = vpop.f32.mrb[0].mxu0
  %v571 = vadd.f32 0.0, %v570
  %v572 = vpop.f32.mrb[0].mxu0
  %v573 = vadd.f32 0.0, %v572
  %574 = vmatprep.mubr.f32.mxu0 0.0
  %575 = vmatmul.mubr.f32.gmra.mrb[0].mxu0 %v496
  %v576 = vpop.f32.mrb[0].mxu0
  %v577 = vadd.f32 0.0, %v576
  %v578 = vpop.f32.mrb[0].mxu0
  %v579 = vadd.f32 0.0, %v578
  %580 = vmatprep.mubr.f32.mxu0 0.0
  %581 = vmatmul.mubr.f32.gmra.mrb[0].mxu0 %v499
  %v582 = vpop.f32.mrb[0].mxu0
  %v583 = vadd.f32 0.0, %v582
  %v584 = vpop.f32.mrb[0].mxu0
  %v585 = vadd.f32 0.0, %v584
  %586 = vmatprep.mubr.f32.mxu0 0.0
  %587 = vmatmul.mubr.f32.gmra.mrb[0].mxu0 %v502
  %v588 = vpop.f32.mrb[0].mxu0
  %v589 = vadd.f32 0.0, %v588
  %v590 = vpop.f32.mrb[0].mxu0
  %v591 = vadd.f32 0.0, %v590
  %592 = vdwg.mxu0
  %v593 = vmul.f32 %v571, %v573
  %v594 = vmul.f32 %v577, %v579
  %v595 = vmul.f32 %v583, %v585
  %v596 = vmul.f32 %v589, %v591
  %597 = vset.pattern.permute.xlu0 2
  %598 = vperm.xlu0 %597, %v33
  %v599 = vpop.permute.xlu0 %598
  %601 = vset.pattern.permute.xlu0 2
  %602 = vperm.xlu0 %601, %v34
  %v603 = vpop.permute.xlu0 %602
  %605 = vset.pattern.permute.xlu0 2
  %606 = vperm.xlu0 %605, %v35
  %v607 = vpop.permute.xlu0 %606
  %609 = vset.pattern.permute.xlu0 2
  %610 = vperm.xlu0 %609, %v36
  %v611 = vpop.permute.xlu0 %610
  %613 = vrot.lane.b32.xlu0 %v25, 32
  %v614 = vpop.permute.xlu0 %613
  %615 = vrot.lane.b32.xlu0 %v27, 32
  %v616 = vpop.permute.xlu0 %615
  %617 = vrot.lane.b32.xlu0 %v29, 32
  %v618 = vpop.permute.xlu0 %617
  %619 = vrot.lane.b32.xlu0 %v31, 32
  %v620 = vpop.permute.xlu0 %619
  %v621 = vsel %vm147, %v614, 0
  %v623 = vsel %vm147, %v616, 0
  %v625 = vsel %vm147, %v618, 0
  %v627 = vsel %vm147, %v620, 0
  %629 = vmatprep.subr.mxu0 0.0
  %630 = vmatpush1.msra.mxu0 %v593
  %631 = vmatprep.subr.mxu0 0.0
  %632 = vmatpush1.msra.mxu0 %v594
  %633 = vmatprep.subr.mxu0 0.0
  %634 = vmatpush1.msra.mxu0 %v595
  %635 = vmatprep.subr.mxu0 0.0
  %636 = vmatpush1.msra.mxu0 %v596
  %637 = vmatprep.subr.mxu0 0.0
  %638 = vmatpush1.msra.mxu0 0.0
  %639 = vmatprep.subr.mxu0 0.0
  %640 = vmatpush1.msra.mxu0 0.0
  %641 = vmatprep.subr.mxu0 0.0
  %642 = vmatpush1.msra.mxu0 0.0
  %643 = vmatprep.subr.mxu0 0.0
  %644 = vmatpush1.msra.mxu0 0.0
  %645 = vmatprep.subr.mxu0 0.0
  %646 = vmatpush1.msra.mxu0 0.0
  %647 = vmatprep.subr.mxu0 0.0
  %648 = vmatpush1.msra.mxu0 0.0
  %649 = vmatprep.subr.mxu0 0.0
  %650 = vmatpush1.msra.mxu0 0.0
  %651 = vmatprep.subr.mxu0 0.0
  %652 = vmatpush1.msra.mxu0 0.0
  %653 = vmatprep.subr.mxu0 0.0
  %654 = vmatpush1.msra.mxu0 0.0
  %655 = vmatprep.subr.mxu0 0.0
  %656 = vmatpush1.msra.mxu0 0.0
  %657 = vmatprep.subr.mxu0 0.0
  %658 = vmatpush1.msra.mxu0 0.0
  %659 = vmatprep.subr.mxu0 0.0
  %660 = vmatpush1.msra.mxu0 0.0
  %661 = vmatprep.subr.mxu0 0.0
  %662 = vmatpush1.msra.mxu0 0.0
  %663 = vmatprep.subr.mxu0 0.0
  %664 = vmatpush1.msra.mxu0 0.0
  %665 = vmatprep.subr.mxu0 0.0
  %666 = vmatpush1.msra.mxu0 0.0
  %667 = vmatprep.subr.mxu0 0.0
  %668 = vmatpush1.msra.mxu0 0.0
  %669 = vmatprep.subr.mxu0 0.0
  %670 = vmatpush1.msra.mxu0 0.0
  %671 = vmatprep.subr.mxu0 0.0
  %672 = vmatpush1.msra.mxu0 0.0
  %673 = vmatprep.subr.mxu0 0.0
  %674 = vmatpush1.msra.mxu0 0.0
  %675 = vmatprep.subr.mxu0 0.0
  %676 = vmatpush1.msra.mxu0 0.0
  %677 = vmatprep.subr.mxu0 0.0
  %678 = vmatpush1.msra.mxu0 0.0
  %679 = vmatprep.subr.mxu0 0.0
  %680 = vmatpush1.msra.mxu0 0.0
  %681 = vmatprep.subr.mxu0 0.0
  %682 = vmatpush1.msra.mxu0 0.0
  %683 = vmatprep.subr.mxu0 0.0
  %684 = vmatpush1.msra.mxu0 0.0
  %685 = vmatprep.subr.mxu0 0.0
  %686 = vmatpush1.msra.mxu0 0.0
  %687 = vmatprep.subr.mxu0 0.0
  %688 = vmatpush1.msra.mxu0 0.0
  %689 = vmatprep.subr.mxu0 0.0
  %690 = vmatpush1.msra.mxu0 0.0
  %691 = vmatprep.subr.mxu0 0.0
  %692 = vmatpush1.msra.mxu0 0.0
  %693 = vmatprep.mubr.f32.mxu0 0.0
  %694 = vmatmul.mubr.f32.gmra.mrb[0].mxu0 %v621
  %v695 = vpop.f32.mrb[0].mxu0
  %v696 = vadd.f32 %v599, %v695
  %v697 = vpop.f32.mrb[0].mxu0
  %698 = vmatprep.mubr.f32.mxu0 0.0
  %699 = vmatmul.mubr.f32.gmra.mrb[0].mxu0 %v623
  %v700 = vpop.f32.mrb[0].mxu0
  %v701 = vadd.f32 %v603, %v700
  %v702 = vpop.f32.mrb[0].mxu0
  %703 = vmatprep.mubr.f32.mxu0 0.0
  %704 = vmatmul.mubr.f32.gmra.mrb[0].mxu0 %v625
  %v705 = vpop.f32.mrb[0].mxu0
  %v706 = vadd.f32 %v607, %v705
  %v707 = vpop.f32.mrb[0].mxu0
  %708 = vmatprep.mubr.f32.mxu0 0.0
  %709 = vmatmul.mubr.f32.gmra.mrb[0].mxu0 %v627
  %v710 = vpop.f32.mrb[0].mxu0
  %v711 = vadd.f32 %v611, %v710
  %v712 = vpop.f32.mrb[0].mxu0
  %713 = vdwg.mxu0
  %v714 = vmax.f32 %v696, 0.0
  %v715 = vmax.f32 %v701, 0.0
  %v716 = vmax.f32 %v706, 0.0
  %v717 = vmax.f32 %v711, 0.0
  %718 = vset.pattern.permute.xlu0 3
  %719 = vperm.xlu0 %718, %v33
  %v720 = vpop.permute.xlu0 %719
  %722 = vset.pattern.permute.xlu0 3
  %723 = vperm.xlu0 %722, %v34
  %v724 = vpop.permute.xlu0 %723
  %726 = vset.pattern.permute.xlu0 3
  %727 = vperm.xlu0 %726, %v35
  %v728 = vpop.permute.xlu0 %727
  %730 = vset.pattern.permute.xlu0 3
  %731 = vperm.xlu0 %730, %v36
  %v732 = vpop.permute.xlu0 %731
  %v735 = vsel %vm147, %v26, 0
  %v738 = vsel %vm147, %v28, 0
  %v741 = vsel %vm147, %v30, 0
  %v744 = vsel %vm147, %v32, 0
  %746 = vmatprep.subr.mxu0 0.0
  %747 = vmatpush1.msra.mxu0 %v714
  %748 = vmatprep.subr.mxu0 0.0
  %749 = vmatpush1.msra.mxu0 %v715
  %750 = vmatprep.subr.mxu0 0.0
  %751 = vmatpush1.msra.mxu0 %v716
  %752 = vmatprep.subr.mxu0 0.0
  %753 = vmatpush1.msra.mxu0 %v717
  %754 = vmatprep.subr.mxu0 0.0
  %755 = vmatpush1.msra.mxu0 0.0
  %756 = vmatprep.subr.mxu0 0.0
  %757 = vmatpush1.msra.mxu0 0.0
  %758 = vmatprep.subr.mxu0 0.0
  %759 = vmatpush1.msra.mxu0 0.0
  %760 = vmatprep.subr.mxu0 0.0
  %761 = vmatpush1.msra.mxu0 0.0
  %762 = vmatprep.subr.mxu0 0.0
  %763 = vmatpush1.msra.mxu0 0.0
  %764 = vmatprep.subr.mxu0 0.0
  %765 = vmatpush1.msra.mxu0 0.0
  %766 = vmatprep.subr.mxu0 0.0
  %767 = vmatpush1.msra.mxu0 0.0
  %768 = vmatprep.subr.mxu0 0.0
  %769 = vmatpush1.msra.mxu0 0.0
  %770 = vmatprep.subr.mxu0 0.0
  %771 = vmatpush1.msra.mxu0 0.0
  %772 = vmatprep.subr.mxu0 0.0
  %773 = vmatpush1.msra.mxu0 0.0
  %774 = vmatprep.subr.mxu0 0.0
  %775 = vmatpush1.msra.mxu0 0.0
  %776 = vmatprep.subr.mxu0 0.0
  %777 = vmatpush1.msra.mxu0 0.0
  %778 = vmatprep.subr.mxu0 0.0
  %779 = vmatpush1.msra.mxu0 0.0
  %780 = vmatprep.subr.mxu0 0.0
  %781 = vmatpush1.msra.mxu0 0.0
  %782 = vmatprep.subr.mxu0 0.0
  %783 = vmatpush1.msra.mxu0 0.0
  %784 = vmatprep.subr.mxu0 0.0
  %785 = vmatpush1.msra.mxu0 0.0
  %786 = vmatprep.subr.mxu0 0.0
  %787 = vmatpush1.msra.mxu0 0.0
  %788 = vmatprep.subr.mxu0 0.0
  %789 = vmatpush1.msra.mxu0 0.0
  %790 = vmatprep.subr.mxu0 0.0
  %791 = vmatpush1.msra.mxu0 0.0
  %792 = vmatprep.subr.mxu0 0.0
  %793 = vmatpush1.msra.mxu0 0.0
  %794 = vmatprep.subr.mxu0 0.0
  %795 = vmatpush1.msra.mxu0 0.0
  %796 = vmatprep.subr.mxu0 0.0
  %797 = vmatpush1.msra.mxu0 0.0
  %798 = vmatprep.subr.mxu0 0.0
  %799 = vmatpush1.msra.mxu0 0.0
  %800 = vmatprep.subr.mxu0 0.0
  %801 = vmatpush1.msra.mxu0 0.0
  %802 = vmatprep.subr.mxu0 0.0
  %803 = vmatpush1.msra.mxu0 0.0
  %804 = vmatprep.subr.mxu0 0.0
  %805 = vmatpush1.msra.mxu0 0.0
  %806 = vmatprep.subr.mxu0 0.0
  %807 = vmatpush1.msra.mxu0 0.0
  %808 = vmatprep.subr.mxu0 0.0
  %809 = vmatpush1.msra.mxu0 0.0
  %810 = vmatprep.mubr.f32.mxu0 0.0
  %811 = vmatmul.mubr.f32.gmra.mrb[0].mxu0 %v735
  %v812 = vpop.f32.mrb[0].mxu0
  %v813 = vadd.f32 %v720, %v812
  %v814 = vpop.f32.mrb[0].mxu0
  %815 = vmatprep.mubr.f32.mxu0 0.0
  %816 = vmatmul.mubr.f32.gmra.mrb[0].mxu0 %v738
  %v817 = vpop.f32.mrb[0].mxu0
  %v818 = vadd.f32 %v724, %v817
  %v819 = vpop.f32.mrb[0].mxu0
  %820 = vmatprep.mubr.f32.mxu0 0.0
  %821 = vmatmul.mubr.f32.gmra.mrb[0].mxu0 %v741
  %v822 = vpop.f32.mrb[0].mxu0
  %v823 = vadd.f32 %v728, %v822
  %v824 = vpop.f32.mrb[0].mxu0
  %825 = vmatprep.mubr.f32.mxu0 0.0
  %826 = vmatmul.mubr.f32.gmra.mrb[0].mxu0 %v744
  %v827 = vpop.f32.mrb[0].mxu0
  %v828 = vadd.f32 %v732, %v827
  %v829 = vpop.f32.mrb[0].mxu0
  %830 = vdwg.mxu0
  %v831 = vmax.f32 %v813, 0.0
  %v832 = vmax.f32 %v818, 0.0
  %v833 = vmax.f32 %v823, 0.0
  %v834 = vmax.f32 %v828, 0.0
  %835 = vset.pattern.permute.xlu0 4
  %836 = vperm.xlu0 %835, %v33
  %v837 = vpop.permute.xlu0 %836
  %839 = vset.pattern.permute.xlu0 4
  %840 = vperm.xlu0 %839, %v34
  %v841 = vpop.permute.xlu0 %840
  %843 = vset.pattern.permute.xlu0 4
  %844 = vperm.xlu0 %843, %v35
  %v845 = vpop.permute.xlu0 %844
  %847 = vset.pattern.permute.xlu0 4
  %848 = vperm.xlu0 %847, %v36
  %v849 = vpop.permute.xlu0 %848
  %v851 = vmul.f32 %v831, %v837
  %v852 = vmul.f32 %v832, %v841
  %v853 = vmul.f32 %v833, %v845
  %v854 = vmul.f32 %v834, %v849
  %v855 = vadd.f32 %v851, %v852
  %v856 = vadd.f32 %v855, %v853
  %v857 = vadd.f32 %v856, %v854
  %v858 = vrot.slane %v857, 4
  %v859 = vadd.f32 %v857, %v858
  %v860 = vrot.slane %v859, 2
  %v861 = vadd.f32 %v859, %v860
  %v862 = vrot.slane %v861, 1
  %v863 = vadd.f32 %v861, %v862
  %864 = vset.pattern.permute.xlu0 5
  %865 = vperm.xlu0 %864, %v33
  %v866 = vpop.permute.xlu0 %865
  %v868 = vadd.f32 %v863, %v866
  %869 = vst [vmem:[%s6] sm:$0x1] %v868
  // Predicated region
  $region26: #{sage_forward.1} parent=0 // pred_check
    _
  $region27: #{sage_forward.1} parent=0 // pred_check_branch
    %871 = sbr.rel (0) target = $region29
  $region28: #{sage_forward.1} parent=0 // pred_region
    _
  $region29: #{sage_forward.1} parent=0 // pred_fallthru
    _
  // Predicated region
  $region30: #{sage_forward.1} parent=0 // pred_check
    _
  $region31: #{sage_forward.1} parent=0 // pred_check_branch
    %873 = sbr.rel (0) target = $region33
  $region32: #{sage_forward.1} parent=0 // pred_region
    _
  $region33: #{sage_forward.1} parent=0 // pred_fallthru
    _

</llo_original>
